<compile_context>
chip_gen: v7x
topology: tpu7x:2x2x1
jax: 0.10.0
libtpu: 0.0.40
codegen_flags: <defaults>
</compile_context>

<pallas_src>
import functools

import jax
import jax.numpy as jnp
from jax import lax
from jax.experimental import pallas as pl
from jax.experimental.pallas import tpu as pltpu


def _round_up(x, m):
    return ((x + m - 1) // m) * m


def _embedding_gather_kernel(ids_ref, w_ref, o_ref, *, tok_blk, vocab):
    # ids_ref: SMEM (N_pad,) int32   -- all token ids (scalar-prefetched)
    # w_ref:   VMEM (V, E)           -- full embedding table (resident)
    # o_ref:   VMEM (tok_blk, E)     -- gathered rows for this token block
    base = pl.program_id(0) * tok_blk

    def copy_row(t):
        row = ids_ref[base + t]
        row = jnp.clip(row, 0, vocab - 1)          # never read OOB
        o_ref[pl.ds(t, 1), :] = w_ref[pl.ds(row, 1), :]

    if tok_blk <= 64:
        # Small block: fully static destination offsets, cheap to unroll.
        for t in range(tok_blk):
            copy_row(t)
    else:
        def body(t, carry):
            copy_row(t)
            return carry

        lax.fori_loop(0, tok_blk, body, 0)


def word_embedding(x, weight, *, tok_blk=512):
    """Pallas equivalent of nn.Embedding(numb_words, embed_dim) forward."""
    B, S = x.shape
    V, E = weight.shape
    N = B * S

    # Clamp the token block to the actual token count (8-aligned) so small
    # inputs are not padded up to a huge block; keep it a multiple of 8 so the
    # output BlockSpec's second-minor dim is always legal.
    tok_blk = min(tok_blk, _round_up(N, 8))
    tok_blk = max(8, (tok_blk // 8) * 8)
    N_pad = _round_up(N, tok_blk)

    itemsize = jnp.dtype(weight.dtype).itemsize
    table_bytes = V * E * itemsize
    if table_bytes > 12 * 1024 * 1024:
        # TODO(synk): HBM row-gather path (weight in pl.ANY + per-block
        # make_async_copy gathers) for large vocabularies.
        raise NotImplementedError(
            "Resident-table embedding kernel only supports tables <= 12 MiB.")

    ids = x.reshape(N).astype(jnp.int32)
    if N_pad != N:
        ids = jnp.concatenate([ids, jnp.zeros((N_pad - N,), jnp.int32)])

    kernel = functools.partial(_embedding_gather_kernel, tok_blk=tok_blk, vocab=V)

    # VMEM budget: (double-buffered) resident table + double-buffered output
    # tile + ids/slack.  With the 12 MiB table cap this stays <= ~28 MiB.
    vmem_need = 2 * table_bytes + 2 * tok_blk * E * itemsize + (1 << 20)
    vmem_limit = min(max(int(vmem_need), 32 * 1024 * 1024), 48 * 1024 * 1024)

    out_flat = pl.pallas_call(
        kernel,
        out_shape=jax.ShapeDtypeStruct((N_pad, E), weight.dtype),
        grid_spec=pltpu.PrefetchScalarGridSpec(
            num_scalar_prefetch=1,
            grid=(N_pad // tok_blk,),
            in_specs=[
                # Full embedding table, same block every step (stays in VMEM).
                pl.BlockSpec((V, E), lambda i, ids_ref: (0, 0)),
            ],
            out_specs=pl.BlockSpec((tok_blk, E), lambda i, ids_ref: (i, 0)),
        ),
        compiler_params=pltpu.CompilerParams(
            dimension_semantics=("parallel",),   # token blocks independent
            vmem_limit_bytes=int(vmem_limit),
        ),
    )(ids, weight)

    if N_pad != N:
        out_flat = out_flat[:N]
    return out_flat.reshape(B, S, E)


if __name__ == "__main__":
    # Module hyperparameters (small, consistent with WordEmbedding.__init__)
    numb_words = 64
    embed_dim = 300   # module default; exercises the unpadded-E (300-wide) path

    key = jax.random.PRNGKey(0)
    k_w, k_x = jax.random.split(key)

    # nn.Embedding default init: N(0, 1)
    weight = jax.random.normal(k_w, (numb_words, embed_dim), dtype=jnp.float32)

    # Input token ids: batch=2, seq=8
    x = jax.random.randint(k_x, (2, 8), minval=0, maxval=numb_words, dtype=jnp.int32)

    out = word_embedding(x, weight)
    out = jax.block_until_ready(out)

    # Reference: plain gather (what nn.Embedding does)
    ref = weight[x]
    assert out.shape == (2, 8, embed_dim)
    assert jnp.array_equal(out, ref), "mismatch vs reference embedding lookup"

    print("KERNEL_OK")
</pallas_src>

<mosaic_0001>
module attributes {stable_mosaic.version = 11 : i64} {
  func.func @_embedding_gather_kernel(%arg0: i32, %arg1: memref<16xi32, #tpu.memory_space<smem>>, %arg2: memref<64x300xf32, #tpu.memory_space<vmem>>, %arg3: memref<16x300xf32, #tpu.memory_space<vmem>>) attributes {dimension_semantics = [#tpu.dimension_semantics<parallel>], iteration_bounds = array<i64: 1>, scalar_prefetch = 1 : i64, scratch_operands = 0 : i64, tpu.core_type = #tpu.core_type<tc>, window_params = [{pipeline_mode = #tpu.pipeline_mode<synchronous>, transform_indices = @transform_0, window_bounds = array<i64: 64, 300>}, {transform_indices = @transform_1, window_bounds = array<i64: 16, 300>}]} {
    %c16_i32 = arith.constant 16 : i32
    %0 = arith.muli %arg0, %c16_i32 : i32
    %c0_i32 = arith.constant 0 : i32
    %1 = arith.addi %0, %c0_i32 : i32
    %2 = arith.index_cast %1 : i32 to index
    %3 = memref.load %arg1[%2] : memref<16xi32, #tpu.memory_space<smem>>
    %c0_i32_0 = arith.constant 0 : i32
    %c63_i32 = arith.constant 63 : i32
    %4 = arith.maxsi %c0_i32_0, %3 : i32
    %5 = arith.minsi %c63_i32, %4 : i32
    %6 = arith.index_cast %5 : i32 to index
    %c0 = arith.constant 0 : index
    %7 = vector.load %arg2[%6, %c0] : memref<64x300xf32, #tpu.memory_space<vmem>>, vector<1x300xf32>
    %c0_1 = arith.constant 0 : index
    %c0_2 = arith.constant 0 : index
    %8 = vector.load %arg3[%c0_1, %c0_2] : memref<16x300xf32, #tpu.memory_space<vmem>>, vector<1x300xf32>
    tpu.vector_store %arg3[%c0_1, %c0_2], %7 {strides = array<i32>} : memref<16x300xf32, #tpu.memory_space<vmem>>, vector<1x300xf32>,
    %c1_i32 = arith.constant 1 : i32
    %9 = arith.addi %0, %c1_i32 : i32
    %10 = arith.index_cast %9 : i32 to index
    %11 = memref.load %arg1[%10] : memref<16xi32, #tpu.memory_space<smem>>
    %c0_i32_3 = arith.constant 0 : i32
    %c63_i32_4 = arith.constant 63 : i32
    %12 = arith.maxsi %c0_i32_3, %11 : i32
    %13 = arith.minsi %c63_i32_4, %12 : i32
    %14 = arith.index_cast %13 : i32 to index
    %c0_5 = arith.constant 0 : index
    %15 = vector.load %arg2[%14, %c0_5] : memref<64x300xf32, #tpu.memory_space<vmem>>, vector<1x300xf32>
    %c1 = arith.constant 1 : index
    %c0_6 = arith.constant 0 : index
    %16 = vector.load %arg3[%c1, %c0_6] : memref<16x300xf32, #tpu.memory_space<vmem>>, vector<1x300xf32>
    tpu.vector_store %arg3[%c1, %c0_6], %15 {strides = array<i32>} : memref<16x300xf32, #tpu.memory_space<vmem>>, vector<1x300xf32>,
    %c2_i32 = arith.constant 2 : i32
    %17 = arith.addi %0, %c2_i32 : i32
    %18 = arith.index_cast %17 : i32 to index
    %19 = memref.load %arg1[%18] : memref<16xi32, #tpu.memory_space<smem>>
    %c0_i32_7 = arith.constant 0 : i32
    %c63_i32_8 = arith.constant 63 : i32
    %20 = arith.maxsi %c0_i32_7, %19 : i32
    %21 = arith.minsi %c63_i32_8, %20 : i32
    %22 = arith.index_cast %21 : i32 to index
    %c0_9 = arith.constant 0 : index
    %23 = vector.load %arg2[%22, %c0_9] : memref<64x300xf32, #tpu.memory_space<vmem>>, vector<1x300xf32>
    %c2 = arith.constant 2 : index
    %c0_10 = arith.constant 0 : index
    %24 = vector.load %arg3[%c2, %c0_10] : memref<16x300xf32, #tpu.memory_space<vmem>>, vector<1x300xf32>
    tpu.vector_store %arg3[%c2, %c0_10], %23 {strides = array<i32>} : memref<16x300xf32, #tpu.memory_space<vmem>>, vector<1x300xf32>,
    %c3_i32 = arith.constant 3 : i32
    %25 = arith.addi %0, %c3_i32 : i32
    %26 = arith.index_cast %25 : i32 to index
    %27 = memref.load %arg1[%26] : memref<16xi32, #tpu.memory_space<smem>>
    %c0_i32_11 = arith.constant 0 : i32
    %c63_i32_12 = arith.constant 63 : i32
    %28 = arith.maxsi %c0_i32_11, %27 : i32
    %29 = arith.minsi %c63_i32_12, %28 : i32
    %30 = arith.index_cast %29 : i32 to index
    %c0_13 = arith.constant 0 : index
    %31 = vector.load %arg2[%30, %c0_13] : memref<64x300xf32, #tpu.memory_space<vmem>>, vector<1x300xf32>
    %c3 = arith.constant 3 : index
    %c0_14 = arith.constant 0 : index
    %32 = vector.load %arg3[%c3, %c0_14] : memref<16x300xf32, #tpu.memory_space<vmem>>, vector<1x300xf32>
    tpu.vector_store %arg3[%c3, %c0_14], %31 {strides = array<i32>} : memref<16x300xf32, #tpu.memory_space<vmem>>, vector<1x300xf32>,
    %c4_i32 = arith.constant 4 : i32
    %33 = arith.addi %0, %c4_i32 : i32
    %34 = arith.index_cast %33 : i32 to index
    %35 = memref.load %arg1[%34] : memref<16xi32, #tpu.memory_space<smem>>
    %c0_i32_15 = arith.constant 0 : i32
    %c63_i32_16 = arith.constant 63 : i32
    %36 = arith.maxsi %c0_i32_15, %35 : i32
    %37 = arith.minsi %c63_i32_16, %36 : i32
    %38 = arith.index_cast %37 : i32 to index
    %c0_17 = arith.constant 0 : index
    %39 = vector.load %arg2[%38, %c0_17] : memref<64x300xf32, #tpu.memory_space<vmem>>, vector<1x300xf32>
    %c4 = arith.constant 4 : index
    %c0_18 = arith.constant 0 : index
    %40 = vector.load %arg3[%c4, %c0_18] : memref<16x300xf32, #tpu.memory_space<vmem>>, vector<1x300xf32>
    tpu.vector_store %arg3[%c4, %c0_18], %39 {strides = array<i32>} : memref<16x300xf32, #tpu.memory_space<vmem>>, vector<1x300xf32>,
    %c5_i32 = arith.constant 5 : i32
    %41 = arith.addi %0, %c5_i32 : i32
    %42 = arith.index_cast %41 : i32 to index
    %43 = memref.load %arg1[%42] : memref<16xi32, #tpu.memory_space<smem>>
    %c0_i32_19 = arith.constant 0 : i32
    %c63_i32_20 = arith.constant 63 : i32
    %44 = arith.maxsi %c0_i32_19, %43 : i32
    %45 = arith.minsi %c63_i32_20, %44 : i32
    %46 = arith.index_cast %45 : i32 to index
    %c0_21 = arith.constant 0 : index
    %47 = vector.load %arg2[%46, %c0_21] : memref<64x300xf32, #tpu.memory_space<vmem>>, vector<1x300xf32>
    %c5 = arith.constant 5 : index
    %c0_22 = arith.constant 0 : index
    %48 = vector.load %arg3[%c5, %c0_22] : memref<16x300xf32, #tpu.memory_space<vmem>>, vector<1x300xf32>
    tpu.vector_store %arg3[%c5, %c0_22], %47 {strides = array<i32>} : memref<16x300xf32, #tpu.memory_space<vmem>>, vector<1x300xf32>,
    %c6_i32 = arith.constant 6 : i32
    %49 = arith.addi %0, %c6_i32 : i32
    %50 = arith.index_cast %49 : i32 to index
    %51 = memref.load %arg1[%50] : memref<16xi32, #tpu.memory_space<smem>>
    %c0_i32_23 = arith.constant 0 : i32
    %c63_i32_24 = arith.constant 63 : i32
    %52 = arith.maxsi %c0_i32_23, %51 : i32
    %53 = arith.minsi %c63_i32_24, %52 : i32
    %54 = arith.index_cast %53 : i32 to index
    %c0_25 = arith.constant 0 : index
    %55 = vector.load %arg2[%54, %c0_25] : memref<64x300xf32, #tpu.memory_space<vmem>>, vector<1x300xf32>
    %c6 = arith.constant 6 : index
    %c0_26 = arith.constant 0 : index
    %56 = vector.load %arg3[%c6, %c0_26] : memref<16x300xf32, #tpu.memory_space<vmem>>, vector<1x300xf32>
    tpu.vector_store %arg3[%c6, %c0_26], %55 {strides = array<i32>} : memref<16x300xf32, #tpu.memory_space<vmem>>, vector<1x300xf32>,
    %c7_i32 = arith.constant 7 : i32
    %57 = arith.addi %0, %c7_i32 : i32
    %58 = arith.index_cast %57 : i32 to index
    %59 = memref.load %arg1[%58] : memref<16xi32, #tpu.memory_space<smem>>
    %c0_i32_27 = arith.constant 0 : i32
    %c63_i32_28 = arith.constant 63 : i32
    %60 = arith.maxsi %c0_i32_27, %59 : i32
    %61 = arith.minsi %c63_i32_28, %60 : i32
    %62 = arith.index_cast %61 : i32 to index
    %c0_29 = arith.constant 0 : index
    %63 = vector.load %arg2[%62, %c0_29] : memref<64x300xf32, #tpu.memory_space<vmem>>, vector<1x300xf32>
    %c7 = arith.constant 7 : index
    %c0_30 = arith.constant 0 : index
    %64 = vector.load %arg3[%c7, %c0_30] : memref<16x300xf32, #tpu.memory_space<vmem>>, vector<1x300xf32>
    tpu.vector_store %arg3[%c7, %c0_30], %63 {strides = array<i32>} : memref<16x300xf32, #tpu.memory_space<vmem>>, vector<1x300xf32>,
    %c8_i32 = arith.constant 8 : i32
    %65 = arith.addi %0, %c8_i32 : i32
    %66 = arith.index_cast %65 : i32 to index
    %67 = memref.load %arg1[%66] : memref<16xi32, #tpu.memory_space<smem>>
    %c0_i32_31 = arith.constant 0 : i32
    %c63_i32_32 = arith.constant 63 : i32
    %68 = arith.maxsi %c0_i32_31, %67 : i32
    %69 = arith.minsi %c63_i32_32, %68 : i32
    %70 = arith.index_cast %69 : i32 to index
    %c0_33 = arith.constant 0 : index
    %71 = vector.load %arg2[%70, %c0_33] : memref<64x300xf32, #tpu.memory_space<vmem>>, vector<1x300xf32>
    %c8 = arith.constant 8 : index
    %c0_34 = arith.constant 0 : index
    %72 = vector.load %arg3[%c8, %c0_34] : memref<16x300xf32, #tpu.memory_space<vmem>>, vector<1x300xf32>
    tpu.vector_store %arg3[%c8, %c0_34], %71 {strides = array<i32>} : memref<16x300xf32, #tpu.memory_space<vmem>>, vector<1x300xf32>,
    %c9_i32 = arith.constant 9 : i32
    %73 = arith.addi %0, %c9_i32 : i32
    %74 = arith.index_cast %73 : i32 to index
    %75 = memref.load %arg1[%74] : memref<16xi32, #tpu.memory_space<smem>>
    %c0_i32_35 = arith.constant 0 : i32
    %c63_i32_36 = arith.constant 63 : i32
    %76 = arith.maxsi %c0_i32_35, %75 : i32
    %77 = arith.minsi %c63_i32_36, %76 : i32
    %78 = arith.index_cast %77 : i32 to index
    %c0_37 = arith.constant 0 : index
    %79 = vector.load %arg2[%78, %c0_37] : memref<64x300xf32, #tpu.memory_space<vmem>>, vector<1x300xf32>
    %c9 = arith.constant 9 : index
    %c0_38 = arith.constant 0 : index
    %80 = vector.load %arg3[%c9, %c0_38] : memref<16x300xf32, #tpu.memory_space<vmem>>, vector<1x300xf32>
    tpu.vector_store %arg3[%c9, %c0_38], %79 {strides = array<i32>} : memref<16x300xf32, #tpu.memory_space<vmem>>, vector<1x300xf32>,
    %c10_i32 = arith.constant 10 : i32
    %81 = arith.addi %0, %c10_i32 : i32
    %82 = arith.index_cast %81 : i32 to index
    %83 = memref.load %arg1[%82] : memref<16xi32, #tpu.memory_space<smem>>
    %c0_i32_39 = arith.constant 0 : i32
    %c63_i32_40 = arith.constant 63 : i32
    %84 = arith.maxsi %c0_i32_39, %83 : i32
    %85 = arith.minsi %c63_i32_40, %84 : i32
    %86 = arith.index_cast %85 : i32 to index
    %c0_41 = arith.constant 0 : index
    %87 = vector.load %arg2[%86, %c0_41] : memref<64x300xf32, #tpu.memory_space<vmem>>, vector<1x300xf32>
    %c10 = arith.constant 10 : index
    %c0_42 = arith.constant 0 : index
    %88 = vector.load %arg3[%c10, %c0_42] : memref<16x300xf32, #tpu.memory_space<vmem>>, vector<1x300xf32>
    tpu.vector_store %arg3[%c10, %c0_42], %87 {strides = array<i32>} : memref<16x300xf32, #tpu.memory_space<vmem>>, vector<1x300xf32>,
    %c11_i32 = arith.constant 11 : i32
    %89 = arith.addi %0, %c11_i32 : i32
    %90 = arith.index_cast %89 : i32 to index
    %91 = memref.load %arg1[%90] : memref<16xi32, #tpu.memory_space<smem>>
    %c0_i32_43 = arith.constant 0 : i32
    %c63_i32_44 = arith.constant 63 : i32
    %92 = arith.maxsi %c0_i32_43, %91 : i32
    %93 = arith.minsi %c63_i32_44, %92 : i32
    %94 = arith.index_cast %93 : i32 to index
    %c0_45 = arith.constant 0 : index
    %95 = vector.load %arg2[%94, %c0_45] : memref<64x300xf32, #tpu.memory_space<vmem>>, vector<1x300xf32>
    %c11 = arith.constant 11 : index
    %c0_46 = arith.constant 0 : index
    %96 = vector.load %arg3[%c11, %c0_46] : memref<16x300xf32, #tpu.memory_space<vmem>>, vector<1x300xf32>
    tpu.vector_store %arg3[%c11, %c0_46], %95 {strides = array<i32>} : memref<16x300xf32, #tpu.memory_space<vmem>>, vector<1x300xf32>,
    %c12_i32 = arith.constant 12 : i32
    %97 = arith.addi %0, %c12_i32 : i32
    %98 = arith.index_cast %97 : i32 to index
    %99 = memref.load %arg1[%98] : memref<16xi32, #tpu.memory_space<smem>>
    %c0_i32_47 = arith.constant 0 : i32
    %c63_i32_48 = arith.constant 63 : i32
    %100 = arith.maxsi %c0_i32_47, %99 : i32
    %101 = arith.minsi %c63_i32_48, %100 : i32
    %102 = arith.index_cast %101 : i32 to index
    %c0_49 = arith.constant 0 : index
    %103 = vector.load %arg2[%102, %c0_49] : memref<64x300xf32, #tpu.memory_space<vmem>>, vector<1x300xf32>
    %c12 = arith.constant 12 : index
    %c0_50 = arith.constant 0 : index
    %104 = vector.load %arg3[%c12, %c0_50] : memref<16x300xf32, #tpu.memory_space<vmem>>, vector<1x300xf32>
    tpu.vector_store %arg3[%c12, %c0_50], %103 {strides = array<i32>} : memref<16x300xf32, #tpu.memory_space<vmem>>, vector<1x300xf32>,
    %c13_i32 = arith.constant 13 : i32
    %105 = arith.addi %0, %c13_i32 : i32
    %106 = arith.index_cast %105 : i32 to index
    %107 = memref.load %arg1[%106] : memref<16xi32, #tpu.memory_space<smem>>
    %c0_i32_51 = arith.constant 0 : i32
    %c63_i32_52 = arith.constant 63 : i32
    %108 = arith.maxsi %c0_i32_51, %107 : i32
    %109 = arith.minsi %c63_i32_52, %108 : i32
    %110 = arith.index_cast %109 : i32 to index
    %c0_53 = arith.constant 0 : index
    %111 = vector.load %arg2[%110, %c0_53] : memref<64x300xf32, #tpu.memory_space<vmem>>, vector<1x300xf32>
    %c13 = arith.constant 13 : index
    %c0_54 = arith.constant 0 : index
    %112 = vector.load %arg3[%c13, %c0_54] : memref<16x300xf32, #tpu.memory_space<vmem>>, vector<1x300xf32>
    tpu.vector_store %arg3[%c13, %c0_54], %111 {strides = array<i32>} : memref<16x300xf32, #tpu.memory_space<vmem>>, vector<1x300xf32>,
    %c14_i32 = arith.constant 14 : i32
    %113 = arith.addi %0, %c14_i32 : i32
    %114 = arith.index_cast %113 : i32 to index
    %115 = memref.load %arg1[%114] : memref<16xi32, #tpu.memory_space<smem>>
    %c0_i32_55 = arith.constant 0 : i32
    %c63_i32_56 = arith.constant 63 : i32
    %116 = arith.maxsi %c0_i32_55, %115 : i32
    %117 = arith.minsi %c63_i32_56, %116 : i32
    %118 = arith.index_cast %117 : i32 to index
    %c0_57 = arith.constant 0 : index
    %119 = vector.load %arg2[%118, %c0_57] : memref<64x300xf32, #tpu.memory_space<vmem>>, vector<1x300xf32>
    %c14 = arith.constant 14 : index
    %c0_58 = arith.constant 0 : index
    %120 = vector.load %arg3[%c14, %c0_58] : memref<16x300xf32, #tpu.memory_space<vmem>>, vector<1x300xf32>
    tpu.vector_store %arg3[%c14, %c0_58], %119 {strides = array<i32>} : memref<16x300xf32, #tpu.memory_space<vmem>>, vector<1x300xf32>,
    %c15_i32 = arith.constant 15 : i32
    %121 = arith.addi %0, %c15_i32 : i32
    %122 = arith.index_cast %121 : i32 to index
    %123 = memref.load %arg1[%122] : memref<16xi32, #tpu.memory_space<smem>>
    %c0_i32_59 = arith.constant 0 : i32
    %c63_i32_60 = arith.constant 63 : i32
    %124 = arith.maxsi %c0_i32_59, %123 : i32
    %125 = arith.minsi %c63_i32_60, %124 : i32
    %126 = arith.index_cast %125 : i32 to index
    %c0_61 = arith.constant 0 : index
    %127 = vector.load %arg2[%126, %c0_61] : memref<64x300xf32, #tpu.memory_space<vmem>>, vector<1x300xf32>
    %c15 = arith.constant 15 : index
    %c0_62 = arith.constant 0 : index
    %128 = vector.load %arg3[%c15, %c0_62] : memref<16x300xf32, #tpu.memory_space<vmem>>, vector<1x300xf32>
    tpu.vector_store %arg3[%c15, %c0_62], %127 {strides = array<i32>} : memref<16x300xf32, #tpu.memory_space<vmem>>, vector<1x300xf32>,
    return
  }
  func.func @transform_0(%arg0: i32, %arg1: memref<16xi32, #tpu.memory_space<smem>>) -> (i32, i32) {
    %c0_i32 = arith.constant 0 : i32
    %c0_i32_0 = arith.constant 0 : i32
    %c0_i32_1 = arith.constant 0 : i32
    return %c0_i32, %c0_i32_0 : i32, i32
  }
  func.func @transform_1(%arg0: i32, %arg1: memref<16xi32, #tpu.memory_space<smem>>) -> (i32, i32) {
    %c0_i32 = arith.constant 0 : i32
    %c0_i32_0 = arith.constant 0 : i32
    return %arg0, %c0_i32 : i32, i32
  }
}

</mosaic_0001>

<llo_original>
// kernel: tpu_custom_call.1
$region0: #{tpu_custom_call.1}
  #allocation0 [shape = 'u32[]', space=smem, size = 0x4, offset = 0x4, fixed_abs, tag = 'smem constant byte address 0x4 - core index']
  #allocation1 [shape = 'u32[144,128]{1,0:T(1,128)}', space=vmem, size = 0x12000, scoped, tag = 'internal scratch']
  #allocation2 [shape = 's32[1]{0}', space=sflag, size = 0x4, scoped, tag = 'scoped memory for tpu_custom_call.1']
  #allocation3 [shape = 'u8[512]{0}', space=smem, size = 0x200, scoped, tag = 'prefetched SMEM operand 0']
  %s0 = inlined_call_operand.hbm [shape: s32[16], index: 0, kind: input, shape index: {}]
  %s1 = inlined_call_operand.hbm [shape: f32[64,300], index: 1, kind: input, shape index: {}]
  %s2 = inlined_call_operand.hbm [shape: f32[16,300], index: 2, kind: output, shape index: {}]
  %s3 = sld [smem:[#allocation0]]
  $region18: #{tpu_custom_call.1} parent=0
    _
  %s5 = ssub.s32 1, %s3
  %s6 = scalar_select 0, %s5, %s3
  %8 = dma.hbm_to_smem %s0, 16, [#allocation3], [#allocation2]
  %9 = dma.done [#allocation2], 16
  %10 = sfence
  $region1: #{tpu_custom_call.1} parent=0
    #allocation4 [shape = 'u8[98304]{0}', space=vmem, size = 0x18000, scoped, tag = 'input window, operand 1, single buffered']
    #allocation5 [shape = 's32[1]{0}', space=sflag, size = 0x4, scoped, tag = 'scoped memory for tpu_custom_call.1']
    #allocation6 [shape = 's32[1]{0}', space=sflag, size = 0x4, scoped, tag = 'scoped memory for tpu_custom_call.1']
    #allocation7 [shape = 'u8[24576]{0}', space=vmem, size = 0x6000, scoped, tag = 'output window, operand 0, single buffered']
    %11 = vsyncpa [#allocation5], 0
    %12 = vsyncpa [#allocation6], 0
    // Predicated region
    $region2: #{tpu_custom_call.1} parent=1 // pred_check
      _
    $region3: #{tpu_custom_call.1} parent=1 // pred_check_branch
      %14 = sbr.rel (0) target = $region5
    $region4: #{tpu_custom_call.1} parent=1 // pred_region
      %s16 = ssub.s32 3072, 3072
      %17 = vsyncadd [#allocation5], %s16
      %s18 = sshll.u32 [#allocation4], 4
      %s19 = int_to_ptr.vmem [resolvable:$true] %s18
      %24 = dma.hbm_to_vmem [thread:$0]  %s1, 3072, %s19, [#allocation5], 384, 384, 24
    $region5: #{tpu_custom_call.1} parent=1 // pred_fallthru
      _
    // Predicated region
    $region6: #{tpu_custom_call.1} parent=1 // pred_check
      _
    $region7: #{tpu_custom_call.1} parent=1 // pred_check_branch
      %26 = sbr.rel (0) target = $region9
    $region8: #{tpu_custom_call.1} parent=1 // pred_region
      %27 = dma.done [#allocation5], 3072
    $region9: #{tpu_custom_call.1} parent=1 // pred_fallthru
      _
    %s28 = smul.u32 0, 16
    %s29 = sld [smem:[#allocation3 + %s28]]
    %p30 = scmp.gt.s32.totalorder %s29, 0
    %s31 = scalar_select %p30, %s29, 0
    %p32 = scmp.lt.s32.totalorder %s31, 63
    %s33 = scalar_select %p32, %s31, 63
    %s34 = sshra.s32 %s33, 3
    %s35 = sand.u32 %s33, 7
    %s36 = sshra.s32 %s33, 3
    %s37 = sand.u32 %s33, 7
    %s38 = smul.u32 %s34, 3
    %s39 = smul.u32 %s38, 8
    %s40 = sadd.s32 %s39, %s37
    %s41 = scalar_lea.vmem [#allocation4], %s40
    %v42 = vld [vmem:[%s41] ss:$8 sm:$0x7]
    %v43 = vlaneseq
    %vm44 = vcmp.ge.s32.totalorder %v43, 0
    %vm45 = vcmp.lt.s32.totalorder %v43, 300
    %vm46 = vmand %vm44, %vm45
    %47 = vst.msk [vmem:[#allocation7] ss:$8 sm:$0x7] %vm46, %v42
    %48 = vst.msk [vmem:[#allocation7] ss:$8 sm:$0x0] %vm46, %v42
    %s49 = sadd.s32 %s28, 1
    %s50 = sld [smem:[#allocation3 + %s49]]
    %p51 = scmp.gt.s32.totalorder %s50, 0
    %s52 = scalar_select %p51, %s50, 0
    %p53 = scmp.lt.s32.totalorder %s52, 63
    %s54 = scalar_select %p53, %s52, 63
    %s55 = sshra.s32 %s54, 3
    %s56 = sand.u32 %s54, 7
    %s57 = sshra.s32 %s54, 3
    %s58 = sand.u32 %s54, 7
    %s59 = smul.u32 %s55, 3
    %s60 = smul.u32 %s59, 8
    %s61 = sadd.s32 %s60, %s58
    %s62 = scalar_lea.vmem [#allocation4], %s61
    %v63 = vld [vmem:[%s62] ss:$8 sm:$0x7]
    %s64 = scalar_lea.vmem [#allocation7], 1
    %65 = vst.msk [vmem:[%s64] ss:$8 sm:$0x7] %vm46, %v63
    %66 = vst.msk [vmem:[%s64] ss:$8 sm:$0x0] %vm46, %v63
    %s67 = sadd.s32 %s28, 2
    %s68 = sld [smem:[#allocation3 + %s67]]
    %p69 = scmp.gt.s32.totalorder %s68, 0
    %s70 = scalar_select %p69, %s68, 0
    %p71 = scmp.lt.s32.totalorder %s70, 63
    %s72 = scalar_select %p71, %s70, 63
    %s73 = sshra.s32 %s72, 3
    %s74 = sand.u32 %s72, 7
    %s75 = sshra.s32 %s72, 3
    %s76 = sand.u32 %s72, 7
    %s77 = smul.u32 %s73, 3
    %s78 = smul.u32 %s77, 8
    %s79 = sadd.s32 %s78, %s76
    %s80 = scalar_lea.vmem [#allocation4], %s79
    %v81 = vld [vmem:[%s80] ss:$8 sm:$0x7]
    %s82 = scalar_lea.vmem [#allocation7], 2
    %83 = vst.msk [vmem:[%s82] ss:$8 sm:$0x7] %vm46, %v81
    %84 = vst.msk [vmem:[%s82] ss:$8 sm:$0x0] %vm46, %v81
    %s85 = sadd.s32 %s28, 3
    %s86 = sld [smem:[#allocation3 + %s85]]
    %p87 = scmp.gt.s32.totalorder %s86, 0
    %s88 = scalar_select %p87, %s86, 0
    %p89 = scmp.lt.s32.totalorder %s88, 63
    %s90 = scalar_select %p89, %s88, 63
    %s91 = sshra.s32 %s90, 3
    %s92 = sand.u32 %s90, 7
    %s93 = sshra.s32 %s90, 3
    %s94 = sand.u32 %s90, 7
    %s95 = smul.u32 %s91, 3
    %s96 = smul.u32 %s95, 8
    %s97 = sadd.s32 %s96, %s94
    %s98 = scalar_lea.vmem [#allocation4], %s97
    %v99 = vld [vmem:[%s98] ss:$8 sm:$0x7]
    %s100 = scalar_lea.vmem [#allocation7], 3
    %101 = vst.msk [vmem:[%s100] ss:$8 sm:$0x7] %vm46, %v99
    %102 = vst.msk [vmem:[%s100] ss:$8 sm:$0x0] %vm46, %v99
    %s103 = sadd.s32 %s28, 4
    %s104 = sld [smem:[#allocation3 + %s103]]
    %p105 = scmp.gt.s32.totalorder %s104, 0
    %s106 = scalar_select %p105, %s104, 0
    %p107 = scmp.lt.s32.totalorder %s106, 63
    %s108 = scalar_select %p107, %s106, 63
    %s109 = sshra.s32 %s108, 3
    %s110 = sand.u32 %s108, 7
    %s111 = sshra.s32 %s108, 3
    %s112 = sand.u32 %s108, 7
    %s113 = smul.u32 %s109, 3
    %s114 = smul.u32 %s113, 8
    %s115 = sadd.s32 %s114, %s112
    %s116 = scalar_lea.vmem [#allocation4], %s115
    %v117 = vld [vmem:[%s116] ss:$8 sm:$0x7]
    %s118 = scalar_lea.vmem [#allocation7], 4
    %119 = vst.msk [vmem:[%s118] ss:$8 sm:$0x7] %vm46, %v117
    %120 = vst.msk [vmem:[%s118] ss:$8 sm:$0x0] %vm46, %v117
    %s121 = sadd.s32 %s28, 5
    %s122 = sld [smem:[#allocation3 + %s121]]
    %p123 = scmp.gt.s32.totalorder %s122, 0
    %s124 = scalar_select %p123, %s122, 0
    %p125 = scmp.lt.s32.totalorder %s124, 63
    %s126 = scalar_select %p125, %s124, 63
    %s127 = sshra.s32 %s126, 3
    %s128 = sand.u32 %s126, 7
    %s129 = sshra.s32 %s126, 3
    %s130 = sand.u32 %s126, 7
    %s131 = smul.u32 %s127, 3
    %s132 = smul.u32 %s131, 8
    %s133 = sadd.s32 %s132, %s130
    %s134 = scalar_lea.vmem [#allocation4], %s133
    %v135 = vld [vmem:[%s134] ss:$8 sm:$0x7]
    %s136 = scalar_lea.vmem [#allocation7], 5
    %137 = vst.msk [vmem:[%s136] ss:$8 sm:$0x7] %vm46, %v135
    %138 = vst.msk [vmem:[%s136] ss:$8 sm:$0x0] %vm46, %v135
    %s139 = sadd.s32 %s28, 6
    %s140 = sld [smem:[#allocation3 + %s139]]
    %p141 = scmp.gt.s32.totalorder %s140, 0
    %s142 = scalar_select %p141, %s140, 0
    %p143 = scmp.lt.s32.totalorder %s142, 63
    %s144 = scalar_select %p143, %s142, 63
    %s145 = sshra.s32 %s144, 3
    %s146 = sand.u32 %s144, 7
    %s147 = sshra.s32 %s144, 3
    %s148 = sand.u32 %s144, 7
    %s149 = smul.u32 %s145, 3
    %s150 = smul.u32 %s149, 8
    %s151 = sadd.s32 %s150, %s148
    %s152 = scalar_lea.vmem [#allocation4], %s151
    %v153 = vld [vmem:[%s152] ss:$8 sm:$0x7]
    %s154 = scalar_lea.vmem [#allocation7], 6
    %155 = vst.msk [vmem:[%s154] ss:$8 sm:$0x7] %vm46, %v153
    %156 = vst.msk [vmem:[%s154] ss:$8 sm:$0x0] %vm46, %v153
    %s157 = sadd.s32 %s28, 7
    %s158 = sld [smem:[#allocation3 + %s157]]
    %p159 = scmp.gt.s32.totalorder %s158, 0
    %s160 = scalar_select %p159, %s158, 0
    %p161 = scmp.lt.s32.totalorder %s160, 63
    %s162 = scalar_select %p161, %s160, 63
    %s163 = sshra.s32 %s162, 3
    %s164 = sand.u32 %s162, 7
    %s165 = sshra.s32 %s162, 3
    %s166 = sand.u32 %s162, 7
    %s167 = smul.u32 %s163, 3
    %s168 = smul.u32 %s167, 8
    %s169 = sadd.s32 %s168, %s166
    %s170 = scalar_lea.vmem [#allocation4], %s169
    %v171 = vld [vmem:[%s170] ss:$8 sm:$0x7]
    %s172 = scalar_lea.vmem [#allocation7], 7
    %173 = vst.msk [vmem:[%s172] ss:$8 sm:$0x7] %vm46, %v171
    %174 = vst.msk [vmem:[%s172] ss:$8 sm:$0x0] %vm46, %v171
    %s175 = sadd.s32 %s28, 8
    %s176 = sld [smem:[#allocation3 + %s175]]
    %p177 = scmp.gt.s32.totalorder %s176, 0
    %s178 = scalar_select %p177, %s176, 0
    %p179 = scmp.lt.s32.totalorder %s178, 63
    %s180 = scalar_select %p179, %s178, 63
    %s181 = sshra.s32 %s180, 3
    %s182 = sand.u32 %s180, 7
    %s183 = sshra.s32 %s180, 3
    %s184 = sand.u32 %s180, 7
    %s185 = smul.u32 %s181, 3
    %s186 = smul.u32 %s185, 8
    %s187 = sadd.s32 %s186, %s184
    %s188 = scalar_lea.vmem [#allocation4], %s187
    %v189 = vld [vmem:[%s188] ss:$8 sm:$0x7]
    %s190 = scalar_lea.vmem [#allocation7], 24
    %191 = vst.msk [vmem:[%s190] ss:$8 sm:$0x7] %vm46, %v189
    %192 = vst.msk [vmem:[%s190] ss:$8 sm:$0x0] %vm46, %v189
    %s193 = sadd.s32 %s28, 9
    %s194 = sld [smem:[#allocation3 + %s193]]
    %p195 = scmp.gt.s32.totalorder %s194, 0
    %s196 = scalar_select %p195, %s194, 0
    %p197 = scmp.lt.s32.totalorder %s196, 63
    %s198 = scalar_select %p197, %s196, 63
    %s199 = sshra.s32 %s198, 3
    %s200 = sand.u32 %s198, 7
    %s201 = sshra.s32 %s198, 3
    %s202 = sand.u32 %s198, 7
    %s203 = smul.u32 %s199, 3
    %s204 = smul.u32 %s203, 8
    %s205 = sadd.s32 %s204, %s202
    %s206 = scalar_lea.vmem [#allocation4], %s205
    %v207 = vld [vmem:[%s206] ss:$8 sm:$0x7]
    %s208 = scalar_lea.vmem [#allocation7], 25
    %209 = vst.msk [vmem:[%s208] ss:$8 sm:$0x7] %vm46, %v207
    %210 = vst.msk [vmem:[%s208] ss:$8 sm:$0x0] %vm46, %v207
    %s211 = sadd.s32 %s28, 10
    %s212 = sld [smem:[#allocation3 + %s211]]
    %p213 = scmp.gt.s32.totalorder %s212, 0
    %s214 = scalar_select %p213, %s212, 0
    %p215 = scmp.lt.s32.totalorder %s214, 63
    %s216 = scalar_select %p215, %s214, 63
    %s217 = sshra.s32 %s216, 3
    %s218 = sand.u32 %s216, 7
    %s219 = sshra.s32 %s216, 3
    %s220 = sand.u32 %s216, 7
    %s221 = smul.u32 %s217, 3
    %s222 = smul.u32 %s221, 8
    %s223 = sadd.s32 %s222, %s220
    %s224 = scalar_lea.vmem [#allocation4], %s223
    %v225 = vld [vmem:[%s224] ss:$8 sm:$0x7]
    %s226 = scalar_lea.vmem [#allocation7], 26
    %227 = vst.msk [vmem:[%s226] ss:$8 sm:$0x7] %vm46, %v225
    %228 = vst.msk [vmem:[%s226] ss:$8 sm:$0x0] %vm46, %v225
    %s229 = sadd.s32 %s28, 11
    %s230 = sld [smem:[#allocation3 + %s229]]
    %p231 = scmp.gt.s32.totalorder %s230, 0
    %s232 = scalar_select %p231, %s230, 0
    %p233 = scmp.lt.s32.totalorder %s232, 63
    %s234 = scalar_select %p233, %s232, 63
    %s235 = sshra.s32 %s234, 3
    %s236 = sand.u32 %s234, 7
    %s237 = sshra.s32 %s234, 3
    %s238 = sand.u32 %s234, 7
    %s239 = smul.u32 %s235, 3
    %s240 = smul.u32 %s239, 8
    %s241 = sadd.s32 %s240, %s238
    %s242 = scalar_lea.vmem [#allocation4], %s241
    %v243 = vld [vmem:[%s242] ss:$8 sm:$0x7]
    %s244 = scalar_lea.vmem [#allocation7], 27
    %245 = vst.msk [vmem:[%s244] ss:$8 sm:$0x7] %vm46, %v243
    %246 = vst.msk [vmem:[%s244] ss:$8 sm:$0x0] %vm46, %v243
    %s247 = sadd.s32 %s28, 12
    %s248 = sld [smem:[#allocation3 + %s247]]
    %p249 = scmp.gt.s32.totalorder %s248, 0
    %s250 = scalar_select %p249, %s248, 0
    %p251 = scmp.lt.s32.totalorder %s250, 63
    %s252 = scalar_select %p251, %s250, 63
    %s253 = sshra.s32 %s252, 3
    %s254 = sand.u32 %s252, 7
    %s255 = sshra.s32 %s252, 3
    %s256 = sand.u32 %s252, 7
    %s257 = smul.u32 %s253, 3
    %s258 = smul.u32 %s257, 8
    %s259 = sadd.s32 %s258, %s256
    %s260 = scalar_lea.vmem [#allocation4], %s259
    %v261 = vld [vmem:[%s260] ss:$8 sm:$0x7]
    %s262 = scalar_lea.vmem [#allocation7], 28
    %263 = vst.msk [vmem:[%s262] ss:$8 sm:$0x7] %vm46, %v261
    %264 = vst.msk [vmem:[%s262] ss:$8 sm:$0x0] %vm46, %v261
    %s265 = sadd.s32 %s28, 13
    %s266 = sld [smem:[#allocation3 + %s265]]
    %p267 = scmp.gt.s32.totalorder %s266, 0
    %s268 = scalar_select %p267, %s266, 0
    %p269 = scmp.lt.s32.totalorder %s268, 63
    %s270 = scalar_select %p269, %s268, 63
    %s271 = sshra.s32 %s270, 3
    %s272 = sand.u32 %s270, 7
    %s273 = sshra.s32 %s270, 3
    %s274 = sand.u32 %s270, 7
    %s275 = smul.u32 %s271, 3
    %s276 = smul.u32 %s275, 8
    %s277 = sadd.s32 %s276, %s274
    %s278 = scalar_lea.vmem [#allocation4], %s277
    %v279 = vld [vmem:[%s278] ss:$8 sm:$0x7]
    %s280 = scalar_lea.vmem [#allocation7], 29
    %281 = vst.msk [vmem:[%s280] ss:$8 sm:$0x7] %vm46, %v279
    %282 = vst.msk [vmem:[%s280] ss:$8 sm:$0x0] %vm46, %v279
    %s283 = sadd.s32 %s28, 14
    %s284 = sld [smem:[#allocation3 + %s283]]
    %p285 = scmp.gt.s32.totalorder %s284, 0
    %s286 = scalar_select %p285, %s284, 0
    %p287 = scmp.lt.s32.totalorder %s286, 63
    %s288 = scalar_select %p287, %s286, 63
    %s289 = sshra.s32 %s288, 3
    %s290 = sand.u32 %s288, 7
    %s291 = sshra.s32 %s288, 3
    %s292 = sand.u32 %s288, 7
    %s293 = smul.u32 %s289, 3
    %s294 = smul.u32 %s293, 8
    %s295 = sadd.s32 %s294, %s292
    %s296 = scalar_lea.vmem [#allocation4], %s295
    %v297 = vld [vmem:[%s296] ss:$8 sm:$0x7]
    %s298 = scalar_lea.vmem [#allocation7], 30
    %299 = vst.msk [vmem:[%s298] ss:$8 sm:$0x7] %vm46, %v297
    %300 = vst.msk [vmem:[%s298] ss:$8 sm:$0x0] %vm46, %v297
    %s301 = sadd.s32 %s28, 15
    %s302 = sld [smem:[#allocation3 + %s301]]
    %p303 = scmp.gt.s32.totalorder %s302, 0
    %s304 = scalar_select %p303, %s302, 0
    %p305 = scmp.lt.s32.totalorder %s304, 63
    %s306 = scalar_select %p305, %s304, 63
    %s307 = sshra.s32 %s306, 3
    %s308 = sand.u32 %s306, 7
    %s309 = sshra.s32 %s306, 3
    %s310 = sand.u32 %s306, 7
    %s311 = smul.u32 %s307, 3
    %s312 = smul.u32 %s311, 8
    %s313 = sadd.s32 %s312, %s310
    %s314 = scalar_lea.vmem [#allocation4], %s313
    %v315 = vld [vmem:[%s314] ss:$8 sm:$0x7]
    %s316 = scalar_lea.vmem [#allocation7], 31
    %317 = vst.msk [vmem:[%s316] ss:$8 sm:$0x7] %vm46, %v315
    %318 = vst.msk [vmem:[%s316] ss:$8 sm:$0x0] %vm46, %v315
    // Predicated region
    $region10: #{tpu_custom_call.1} parent=1 // pred_check
      _
    $region11: #{tpu_custom_call.1} parent=1 // pred_check_branch
      %320 = sbr.rel (0) target = $region13
    $region12: #{tpu_custom_call.1} parent=1 // pred_region
      %s322 = ssub.s32 768, 768
      %323 = vsyncadd [#allocation6], %s322
      %s324 = sshll.u32 [#allocation7], 4
      %s325 = int_to_ptr.vmem [resolvable:$true] %s324
      %330 = dma.vmem_to_hbm [thread:$0]  %s325, 768, %s2, [#allocation6], 384, 384, 24
    $region13: #{tpu_custom_call.1} parent=1 // pred_fallthru
      _
    // Predicated region
    $region14: #{tpu_custom_call.1} parent=1 // pred_check
      _
    $region15: #{tpu_custom_call.1} parent=1 // pred_check_branch
      %332 = sbr.rel (0) target = $region17
    $region16: #{tpu_custom_call.1} parent=1 // pred_region
      %333 = dma.done [#allocation6], 768
    $region17: #{tpu_custom_call.1} parent=1 // pred_fallthru
      _
    %334 = vsyncpa [#allocation5], 1
    %335 = vsyncpa [#allocation6], 1

</llo_original>
